<compile_context>
chip_gen: v7x
topology: tpu7x:2x2x1
jax: 0.10.0
libtpu: 0.0.40
codegen_flags: <defaults>
</compile_context>

<pallas_src>
import jax
import jax.numpy as jnp
import numpy as np
from jax import lax
from jax.experimental import pallas as pl
from jax.experimental.pallas import tpu as pltpu

NEG_SLOPE = 0.01  # nn.LeakyReLU default


def _leaky(x):
    return jnp.where(x > 0, x, NEG_SLOPE * x)


def _round_up(x, m):
    return ((x + m - 1) // m) * m


def encoder_kernel(taps_ref, wc_ref, wfc_ref, bfc_ref, out_ref):
    # taps_ref: (TB, kLfp, L)  im2col taps + ones row (conv bias), zero-padded rows
    # wc_ref  : (kMp, kLfp)    block-diagonal conv weights, bias folded in last col
    # wfc_ref : (kMp*L, bnp)   fc weight, rows ordered (r, t) = torch flatten order
    # bfc_ref : (1, bnp)       fc bias (zero padded to bnp lanes)
    # out_ref : (TB, bnp)
    TB, kLfp, L = taps_ref.shape
    kMp = wc_ref.shape[0]

    taps = taps_ref[...]
    # All k dilated Conv1d layers (+ bias) as one batched MXU matmul.
    wcb = jnp.broadcast_to(wc_ref[...][None, :, :], (TB, kMp, kLfp))
    y = lax.dot_general(wcb, taps,
                        dimension_numbers=(((2,), (1,)), ((0,), (0,))),
                        preferred_element_type=jnp.float32)      # (TB, kMp, L)
    y = _leaky(y)                                                # act1

    # Flatten (r, t) -> column r*L + t (matches torch cat+flatten) via lane concat.
    x_flat = jnp.concatenate([y[:, r, :] for r in range(kMp)], axis=-1)  # (TB, kMp*L)

    # fc_conv_bn: single (TB, kMp*L) @ (kMp*L, bnp) contraction.
    z = jnp.dot(x_flat, wfc_ref[...], preferred_element_type=jnp.float32)
    z = z + bfc_ref[...]
    out_ref[...] = _leaky(z)                                     # last_act


def encoder_forward(x, params, dilation, Lf, apply_noise=False, noise_key=None,
                    batch_block=256):
    """x: (B, 1, length) float32 -> (B, bottleneck_nn) float32."""
    B, _, L = x.shape
    k = len(dilation)
    M = params["w_conv"].shape[1]
    kM = k * M
    bn = params["b_fc"].shape[0]

    if apply_noise:
        # TODO(synk): noise injection (torch.normal + clip) is done in the JAX
        # wrapper rather than in-kernel.
        noise = 0.05 * jax.random.normal(noise_key, x.shape, x.dtype)
        x = jnp.clip(x + noise, 0.0, 1.0)

    # Padded sizes for (8, 128)-aligned, lane-dense tiles.
    kLfp = _round_up(k * Lf + 1, 8)          # +1 ones-row carries the conv bias
    kMp = _round_up(kM, 8)
    bnp = _round_up(bn, 128)
    TB = min(_round_up(B, 8), _round_up(batch_block, 8))
    Bp = _round_up(B, TB)

    # --- glue: im2col taps (per-dilation SAME padding), bias row, zero pad ---
    x2 = x[:, 0, :].astype(jnp.float32)
    cols = []
    for d in dilation:
        p = d * (Lf - 1) // 2
        xp = jnp.pad(x2, ((0, 0), (p, p)))
        for j in range(Lf):
            cols.append(lax.dynamic_slice_in_dim(xp, j * d, L, axis=1))
    cols.append(jnp.ones((B, L), jnp.float32))                   # bias tap
    for _ in range(kLfp - len(cols)):
        cols.append(jnp.zeros((B, L), jnp.float32))
    taps = jnp.stack(cols, axis=1)                               # (B, kLfp, L)
    taps = jnp.pad(taps, ((0, Bp - B), (0, 0), (0, 0)))          # (Bp, kLfp, L)

    # --- glue: parameter packing ---
    wc = jnp.zeros((kMp, kLfp), jnp.float32)                     # block diagonal
    for i in range(k):
        wc = wc.at[i * M:(i + 1) * M, i * Lf:(i + 1) * Lf].set(
            params["w_conv"][i].astype(jnp.float32))
    wc = wc.at[:kM, k * Lf].set(params["b_conv"].reshape(kM).astype(jnp.float32))

    wfc = jnp.zeros((kMp * L, bnp), jnp.float32)                 # (r*L+t, n) order
    wfc = wfc.at[:kM * L, :bn].set(params["w_fc"].astype(jnp.float32).T)
    bfc = jnp.zeros((1, bnp), jnp.float32).at[0, :bn].set(
        params["b_fc"].astype(jnp.float32))

    out = pl.pallas_call(
        encoder_kernel,
        out_shape=jax.ShapeDtypeStruct((Bp, bnp), jnp.float32),
        grid_spec=pltpu.PrefetchScalarGridSpec(
            num_scalar_prefetch=0,
            grid=(Bp // TB,),
            in_specs=[
                pl.BlockSpec((TB, kLfp, L), lambda b: (b, 0, 0)),
                pl.BlockSpec((kMp, kLfp), lambda b: (0, 0)),
                pl.BlockSpec((kMp * L, bnp), lambda b: (0, 0)),
                pl.BlockSpec((1, bnp), lambda b: (0, 0)),
            ],
            out_specs=pl.BlockSpec((TB, bnp), lambda b: (b, 0)),
        ),
        compiler_params=pltpu.CompilerParams(
            dimension_semantics=("parallel",)),
    )(taps, wc, wfc, bfc)
    return out[:B, :bn]


def ref_forward(x, params, dilation, Lf):
    """Pure-JAX reference matching the PyTorch forward (apply_noise=False)."""
    B, _, L = x.shape
    outs = []
    for i, d in enumerate(dilation):
        p = d * (Lf - 1) // 2
        y = lax.conv_general_dilated(
            x, params["w_conv"][i][:, None, :],       # (M, 1, Lf)
            window_strides=(1,), padding=[(p, p)], rhs_dilation=(d,),
            dimension_numbers=("NCH", "OIH", "NCH"))
        y = y + params["b_conv"][i][None, :, None]
        outs.append(y)
    Xc = jnp.concatenate(outs, axis=1).reshape(B, -1)
    Xc = jnp.where(Xc > 0, Xc, NEG_SLOPE * Xc)
    z = Xc @ params["w_fc"].T + params["b_fc"]
    return jnp.where(z > 0, z, NEG_SLOPE * z)


if __name__ == "__main__":
    # Small, consistent hyperparameters: k == len(dilation), Lf odd so the
    # per-dilation padding preserves `length` (as fc_conv_bn's fan-in implies).
    k, M, Lf = 2, 4, 3
    dilation = (1, 2)
    length = 16
    bottleneck_nn = 32
    B = 2

    key = jax.random.PRNGKey(0)
    kx, kw1, kb1, kw2, kb2 = jax.random.split(key, 5)
    x = jax.random.uniform(kx, (B, 1, length), jnp.float32)   # values in [0,1]
    params = {
        "w_conv": 0.3 * jax.random.normal(kw1, (k, M, Lf), jnp.float32),
        "b_conv": 0.1 * jax.random.normal(kb1, (k, M), jnp.float32),
        "w_fc": 0.1 * jax.random.normal(
            kw2, (bottleneck_nn, k * M * length), jnp.float32),
        "b_fc": 0.1 * jax.random.normal(kb2, (bottleneck_nn,), jnp.float32),
    }

    out = encoder_forward(x, params, dilation, Lf, apply_noise=False)
    out = jax.block_until_ready(out)

    ref = ref_forward(x, params, dilation, Lf)
    np.testing.assert_allclose(np.asarray(out), np.asarray(ref),
                               rtol=1e-4, atol=1e-4)
    print("KERNEL_OK")
</pallas_src>

<mosaic_0001>
module attributes {stable_mosaic.version = 11 : i64} {
  func.func @encoder_kernel(%arg0: i32, %arg1: memref<8x8x16xf32, #tpu.memory_space<vmem>>, %arg2: memref<8x8xf32, #tpu.memory_space<vmem>>, %arg3: memref<128x128xf32, #tpu.memory_space<vmem>>, %arg4: memref<1x128xf32, #tpu.memory_space<vmem>>, %arg5: memref<8x128xf32, #tpu.memory_space<vmem>>) attributes {dimension_semantics = [#tpu.dimension_semantics<parallel>], iteration_bounds = array<i64: 1>, scalar_prefetch = 0 : i64, scratch_operands = 0 : i64, tpu.core_type = #tpu.core_type<tc>, window_params = [{transform_indices = @transform_0, window_bounds = array<i64: 8, 8, 16>}, {pipeline_mode = #tpu.pipeline_mode<synchronous>, transform_indices = @transform_1, window_bounds = array<i64: 8, 8>}, {pipeline_mode = #tpu.pipeline_mode<synchronous>, transform_indices = @transform_2, window_bounds = array<i64: 128, 128>}, {pipeline_mode = #tpu.pipeline_mode<synchronous>, transform_indices = @transform_3, window_bounds = array<i64: 1, 128>}, {transform_indices = @transform_4, window_bounds = array<i64: 8, 128>}]} {
    %c0 = arith.constant 0 : index
    %c0_0 = arith.constant 0 : index
    %c0_1 = arith.constant 0 : index
    %0 = vector.load %arg1[%c0, %c0_0, %c0_1] : memref<8x8x16xf32, #tpu.memory_space<vmem>>, vector<8x8x16xf32>
    %c0_2 = arith.constant 0 : index
    %c0_3 = arith.constant 0 : index
    %1 = vector.load %arg2[%c0_2, %c0_3] : memref<8x8xf32, #tpu.memory_space<vmem>>, vector<8x8xf32>
    %2 = vector.shape_cast %1 : vector<8x8xf32> to vector<1x8x8xf32>
    %3 = vector.shape_cast %2 : vector<1x8x8xf32> to vector<1x8x8xf32>
    %4 = vector.broadcast %3 : vector<1x8x8xf32> to vector<8x8x8xf32>
    %cst = arith.constant dense<0.000000e+00> : vector<8x8x16xf32>
    %5 = tpu.matmul %4, %0, %cst {dimension_numbers = #tpu.dot_dimension_numbers<[2], [1], [1], [2], [0, 0, 0, 1, 1, 2], [0], [0]>} : vector<8x8x8xf32>, vector<8x8x16xf32>, vector<8x8x16xf32> -> vector<8x8x16xf32>
    %cst_4 = arith.constant 0.000000e+00 : f32
    %6 = vector.broadcast %cst_4 : f32 to vector<8x8x16xf32>
    %7 = arith.cmpf ogt, %5, %6 : vector<8x8x16xf32>
    %cst_5 = arith.constant 0.00999999977 : f32
    %8 = vector.broadcast %cst_5 : f32 to vector<8x8x16xf32>
    %9 = arith.mulf %8, %5 : vector<8x8x16xf32>
    %10 = arith.select %7, %5, %9 : vector<8x8x16xi1>, vector<8x8x16xf32>
    %11 = vector.extract_strided_slice %10 {offsets = [0, 0, 0], sizes = [8, 1, 16], strides = [1, 1, 1]} : vector<8x8x16xf32> to vector<8x1x16xf32>
    %12 = vector.shape_cast %11 : vector<8x1x16xf32> to vector<8x16xf32>
    %13 = vector.extract_strided_slice %10 {offsets = [0, 1, 0], sizes = [8, 1, 16], strides = [1, 1, 1]} : vector<8x8x16xf32> to vector<8x1x16xf32>
    %14 = vector.shape_cast %13 : vector<8x1x16xf32> to vector<8x16xf32>
    %15 = vector.extract_strided_slice %10 {offsets = [0, 2, 0], sizes = [8, 1, 16], strides = [1, 1, 1]} : vector<8x8x16xf32> to vector<8x1x16xf32>
    %16 = vector.shape_cast %15 : vector<8x1x16xf32> to vector<8x16xf32>
    %17 = vector.extract_strided_slice %10 {offsets = [0, 3, 0], sizes = [8, 1, 16], strides = [1, 1, 1]} : vector<8x8x16xf32> to vector<8x1x16xf32>
    %18 = vector.shape_cast %17 : vector<8x1x16xf32> to vector<8x16xf32>
    %19 = vector.extract_strided_slice %10 {offsets = [0, 4, 0], sizes = [8, 1, 16], strides = [1, 1, 1]} : vector<8x8x16xf32> to vector<8x1x16xf32>
    %20 = vector.shape_cast %19 : vector<8x1x16xf32> to vector<8x16xf32>
    %21 = vector.extract_strided_slice %10 {offsets = [0, 5, 0], sizes = [8, 1, 16], strides = [1, 1, 1]} : vector<8x8x16xf32> to vector<8x1x16xf32>
    %22 = vector.shape_cast %21 : vector<8x1x16xf32> to vector<8x16xf32>
    %23 = vector.extract_strided_slice %10 {offsets = [0, 6, 0], sizes = [8, 1, 16], strides = [1, 1, 1]} : vector<8x8x16xf32> to vector<8x1x16xf32>
    %24 = vector.shape_cast %23 : vector<8x1x16xf32> to vector<8x16xf32>
    %25 = vector.extract_strided_slice %10 {offsets = [0, 7, 0], sizes = [8, 1, 16], strides = [1, 1, 1]} : vector<8x8x16xf32> to vector<8x1x16xf32>
    %26 = vector.shape_cast %25 : vector<8x1x16xf32> to vector<8x16xf32>
    %27 = tpu.concatenate %12, %14, %16, %18, %20, %22, %24, %26 in 1 : vector<8x16xf32>, vector<8x16xf32>, vector<8x16xf32>, vector<8x16xf32>, vector<8x16xf32>, vector<8x16xf32>, vector<8x16xf32>, vector<8x16xf32> -> vector<8x128xf32>
    %c0_6 = arith.constant 0 : index
    %c0_7 = arith.constant 0 : index
    %28 = vector.load %arg3[%c0_6, %c0_7] : memref<128x128xf32, #tpu.memory_space<vmem>>, vector<128x128xf32>
    %cst_8 = arith.constant dense<0.000000e+00> : vector<8x128xf32>
    %29 = tpu.matmul %27, %28, %cst_8 {dimension_numbers = #tpu.dot_dimension_numbers<[1], [0], [0], [1], [0, 0, 1, 1], [], []>} : vector<8x128xf32>, vector<128x128xf32>, vector<8x128xf32> -> vector<8x128xf32>
    %c0_9 = arith.constant 0 : index
    %c0_10 = arith.constant 0 : index
    %30 = vector.load %arg4[%c0_9, %c0_10] : memref<1x128xf32, #tpu.memory_space<vmem>>, vector<1x128xf32>
    %31 = vector.broadcast %30 : vector<1x128xf32> to vector<8x128xf32>
    %32 = arith.addf %29, %31 : vector<8x128xf32>
    %cst_11 = arith.constant 0.000000e+00 : f32
    %33 = vector.broadcast %cst_11 : f32 to vector<8x128xf32>
    %34 = arith.cmpf ogt, %32, %33 : vector<8x128xf32>
    %cst_12 = arith.constant 0.00999999977 : f32
    %35 = vector.broadcast %cst_12 : f32 to vector<8x128xf32>
    %36 = arith.mulf %35, %32 : vector<8x128xf32>
    %37 = arith.select %34, %32, %36 : vector<8x128xi1>, vector<8x128xf32>
    %c0_13 = arith.constant 0 : index
    %c0_14 = arith.constant 0 : index
    %38 = vector.load %arg5[%c0_13, %c0_14] : memref<8x128xf32, #tpu.memory_space<vmem>>, vector<8x128xf32>
    tpu.vector_store %arg5[%c0_13, %c0_14], %37 {strides = array<i32>} : memref<8x128xf32, #tpu.memory_space<vmem>>, vector<8x128xf32>,
    return
  }
  func.func @transform_0(%arg0: i32) -> (i32, i32, i32) {
    %c0_i32 = arith.constant 0 : i32
    %c0_i32_0 = arith.constant 0 : i32
    %c0_i32_1 = arith.constant 0 : i32
    return %arg0, %c0_i32, %c0_i32_0 : i32, i32, i32
  }
  func.func @transform_1(%arg0: i32) -> (i32, i32) {
    %c0_i32 = arith.constant 0 : i32
    %c0_i32_0 = arith.constant 0 : i32
    %c0_i32_1 = arith.constant 0 : i32
    return %c0_i32, %c0_i32_0 : i32, i32
  }
  func.func @transform_2(%arg0: i32) -> (i32, i32) {
    %c0_i32 = arith.constant 0 : i32
    %c0_i32_0 = arith.constant 0 : i32
    %c0_i32_1 = arith.constant 0 : i32
    return %c0_i32, %c0_i32_0 : i32, i32
  }
  func.func @transform_3(%arg0: i32) -> (i32, i32) {
    %c0_i32 = arith.constant 0 : i32
    %c0_i32_0 = arith.constant 0 : i32
    %c0_i32_1 = arith.constant 0 : i32
    return %c0_i32, %c0_i32_0 : i32, i32
  }
  func.func @transform_4(%arg0: i32) -> (i32, i32) {
    %c0_i32 = arith.constant 0 : i32
    %c0_i32_0 = arith.constant 0 : i32
    return %arg0, %c0_i32 : i32, i32
  }
}

</mosaic_0001>

<llo_original>
// kernel: tpu_custom_call.1
$region0: #{tpu_custom_call.1}
  #allocation0 [shape = 'u32[]', space=smem, size = 0x4, offset = 0x4, fixed_abs, tag = 'smem constant byte address 0x4 - core index']
  #allocation1 [shape = 'u32[144,128]{1,0:T(1,128)}', space=vmem, size = 0x12000, scoped, tag = 'internal scratch']
  %s0 = inlined_call_operand.hbm [shape: f32[8,8,16], index: 0, kind: input, shape index: {}]
  %s1 = inlined_call_operand.hbm [shape: f32[8,8], index: 1, kind: input, shape index: {}]
  %s2 = inlined_call_operand.hbm [shape: f32[128,128], index: 2, kind: input, shape index: {}]
  %s3 = inlined_call_operand.vmem [shape: f32[1,128], index: 3, kind: input, shape index: {}]
  %s4 = inlined_call_operand.hbm [shape: f32[8,128], index: 4, kind: output, shape index: {}]
  %s5 = sld [smem:[#allocation0]]
  $region38: #{tpu_custom_call.1} parent=0
    _
  %s7 = ssub.s32 1, %s5
  %s8 = scalar_select 0, %s7, %s5
  $region1: #{tpu_custom_call.1} parent=0
    #allocation2 [shape = 'u8[32768]{0}', space=vmem, size = 0x8000, scoped, tag = 'input window, operand 0, single buffered']
    #allocation3 [shape = 's32[1]{0}', space=sflag, size = 0x4, scoped, tag = 'scoped memory for tpu_custom_call.1']
    #allocation4 [shape = 's32[1]{0}', space=sflag, size = 0x4, scoped, tag = 'scoped memory for tpu_custom_call.1']
    #allocation5 [shape = 'u8[4096]{0}', space=vmem, size = 0x1000, scoped, tag = 'input window, operand 1, single buffered']
    #allocation6 [shape = 's32[1]{0}', space=sflag, size = 0x4, scoped, tag = 'scoped memory for tpu_custom_call.1']
    #allocation7 [shape = 'u8[65536]{0}', space=vmem, size = 0x10000, scoped, tag = 'input window, operand 2, single buffered']
    #allocation8 [shape = 'u8[4096]{0}', space=vmem, size = 0x1000, scoped, tag = 'output window, operand 0, single buffered']
    %9 = vsyncpa [#allocation3], 0
    %10 = vsyncpa [#allocation6], 0
    %11 = vsyncpa [#allocation4], 0
    // Predicated region
    $region2: #{tpu_custom_call.1} parent=1 // pred_check
      _
    $region3: #{tpu_custom_call.1} parent=1 // pred_check_branch
      %13 = sbr.rel (0) target = $region5
    $region4: #{tpu_custom_call.1} parent=1 // pred_region
      %s15 = ssub.s32 1024, 1024
      %16 = vsyncadd [#allocation3], %s15
      %s17 = sshll.u32 [#allocation2], 4
      %s18 = int_to_ptr.vmem [resolvable:$true] %s17
      %23 = dma.hbm_to_vmem [thread:$0]  %s0, 1024, %s18, [#allocation3], 128, 128, 8
    $region5: #{tpu_custom_call.1} parent=1 // pred_fallthru
      _
    // Predicated region
    $region6: #{tpu_custom_call.1} parent=1 // pred_check
      _
    $region7: #{tpu_custom_call.1} parent=1 // pred_check_branch
      %25 = sbr.rel (0) target = $region9
    $region8: #{tpu_custom_call.1} parent=1 // pred_region
      %s27 = ssub.s32 128, 128
      %28 = vsyncadd [#allocation6], %s27
      %s30 = sshll.u32 [#allocation5], 4
      %s31 = int_to_ptr.vmem [resolvable:$true] %s30
      %33 = dma.hbm_to_vmem [thread:$0]  %s1, 128, %s31, [#allocation6]
    $region9: #{tpu_custom_call.1} parent=1 // pred_fallthru
      _
    // Predicated region
    $region10: #{tpu_custom_call.1} parent=1 // pred_check
      _
    $region11: #{tpu_custom_call.1} parent=1 // pred_check_branch
      %35 = sbr.rel (0) target = $region13
    $region12: #{tpu_custom_call.1} parent=1 // pred_region
      %s37 = ssub.s32 2048, 2048
      %38 = vsyncadd [#allocation6], %s37
      %s39 = sshll.u32 [#allocation7], 4
      %s40 = int_to_ptr.vmem [resolvable:$true] %s39
      %45 = dma.hbm_to_vmem [thread:$0]  %s2, 2048, %s40, [#allocation6], 128, 128, 8
    $region13: #{tpu_custom_call.1} parent=1 // pred_fallthru
      _
    // Predicated region
    $region14: #{tpu_custom_call.1} parent=1 // pred_check
      _
    $region15: #{tpu_custom_call.1} parent=1 // pred_check_branch
      %47 = sbr.rel (0) target = $region17
    $region16: #{tpu_custom_call.1} parent=1 // pred_region
      _
    $region17: #{tpu_custom_call.1} parent=1 // pred_fallthru
      _
    // Predicated region
    $region18: #{tpu_custom_call.1} parent=1 // pred_check
      _
    $region19: #{tpu_custom_call.1} parent=1 // pred_check_branch
      %49 = sbr.rel (0) target = $region21
    $region20: #{tpu_custom_call.1} parent=1 // pred_region
      %50 = dma.done [#allocation3], 1024
    $region21: #{tpu_custom_call.1} parent=1 // pred_fallthru
      _
    // Predicated region
    $region22: #{tpu_custom_call.1} parent=1 // pred_check
      _
    $region23: #{tpu_custom_call.1} parent=1 // pred_check_branch
      %52 = sbr.rel (0) target = $region25
    $region24: #{tpu_custom_call.1} parent=1 // pred_region
      %53 = dma.done [#allocation6], 128
    $region25: #{tpu_custom_call.1} parent=1 // pred_fallthru
      _
    // Predicated region
    $region26: #{tpu_custom_call.1} parent=1 // pred_check
      _
    $region27: #{tpu_custom_call.1} parent=1 // pred_check_branch
      %55 = sbr.rel (0) target = $region29
    $region28: #{tpu_custom_call.1} parent=1 // pred_region
      %56 = dma.done [#allocation6], 2048
    $region29: #{tpu_custom_call.1} parent=1 // pred_fallthru
      _
    %v57 = vld [vmem:[#allocation2] sm:$0xff]
    %v58 = vld [vmem:[#allocation2 + $0x8] sm:$0xff]
    %v59 = vld [vmem:[#allocation2 + $0x10] sm:$0xff]
    %v60 = vld [vmem:[#allocation2 + $0x18] sm:$0xff]
    %v61 = vld [vmem:[#allocation2 + $0x20] sm:$0xff]
    %v62 = vld [vmem:[#allocation2 + $0x28] sm:$0xff]
    %v63 = vld [vmem:[#allocation2 + $0x30] sm:$0xff]
    %v64 = vld [vmem:[#allocation2 + $0x38] sm:$0xff]
    %v65 = vld [vmem:[#allocation5] sm:$0xff]
    %vm66 = vcmask 64512
    %v68 = vsel %vm66, %v65, 0
    %70 = vmatprep.subr.mxu0 0.0
    %71 = vmatpush1.msra.mxu0 %v57
    %72 = vmatprep.subr.mxu0 0.0
    %73 = vmatpush1.msra.mxu0 0.0
    %74 = vmatprep.subr.mxu0 0.0
    %75 = vmatpush1.msra.mxu0 0.0
    %76 = vmatprep.subr.mxu0 0.0
    %77 = vmatpush1.msra.mxu0 0.0
    %78 = vmatprep.subr.mxu0 0.0
    %79 = vmatpush1.msra.mxu0 0.0
    %80 = vmatprep.subr.mxu0 0.0
    %81 = vmatpush1.msra.mxu0 0.0
    %82 = vmatprep.subr.mxu0 0.0
    %83 = vmatpush1.msra.mxu0 0.0
    %84 = vmatprep.subr.mxu0 0.0
    %85 = vmatpush1.msra.mxu0 0.0
    %86 = vmatprep.subr.mxu0 0.0
    %87 = vmatpush1.msra.mxu0 0.0
    %88 = vmatprep.subr.mxu0 0.0
    %89 = vmatpush1.msra.mxu0 0.0
    %90 = vmatprep.subr.mxu0 0.0
    %91 = vmatpush1.msra.mxu0 0.0
    %92 = vmatprep.subr.mxu0 0.0
    %93 = vmatpush1.msra.mxu0 0.0
    %94 = vmatprep.subr.mxu0 0.0
    %95 = vmatpush1.msra.mxu0 0.0
    %96 = vmatprep.subr.mxu0 0.0
    %97 = vmatpush1.msra.mxu0 0.0
    %98 = vmatprep.subr.mxu0 0.0
    %99 = vmatpush1.msra.mxu0 0.0
    %100 = vmatprep.subr.mxu0 0.0
    %101 = vmatpush1.msra.mxu0 0.0
    %102 = vmatprep.subr.mxu0 0.0
    %103 = vmatpush1.msra.mxu0 0.0
    %104 = vmatprep.subr.mxu0 0.0
    %105 = vmatpush1.msra.mxu0 0.0
    %106 = vmatprep.subr.mxu0 0.0
    %107 = vmatpush1.msra.mxu0 0.0
    %108 = vmatprep.subr.mxu0 0.0
    %109 = vmatpush1.msra.mxu0 0.0
    %110 = vmatprep.subr.mxu0 0.0
    %111 = vmatpush1.msra.mxu0 0.0
    %112 = vmatprep.subr.mxu0 0.0
    %113 = vmatpush1.msra.mxu0 0.0
    %114 = vmatprep.subr.mxu0 0.0
    %115 = vmatpush1.msra.mxu0 0.0
    %116 = vmatprep.subr.mxu0 0.0
    %117 = vmatpush1.msra.mxu0 0.0
    %118 = vmatprep.subr.mxu0 0.0
    %119 = vmatpush1.msra.mxu0 0.0
    %120 = vmatprep.subr.mxu0 0.0
    %121 = vmatpush1.msra.mxu0 0.0
    %122 = vmatprep.subr.mxu0 0.0
    %123 = vmatpush1.msra.mxu0 0.0
    %124 = vmatprep.subr.mxu0 0.0
    %125 = vmatpush1.msra.mxu0 0.0
    %126 = vmatprep.subr.mxu0 0.0
    %127 = vmatpush1.msra.mxu0 0.0
    %128 = vmatprep.subr.mxu0 0.0
    %129 = vmatpush1.msra.mxu0 0.0
    %130 = vmatprep.subr.mxu0 0.0
    %131 = vmatpush1.msra.mxu0 0.0
    %132 = vmatprep.subr.mxu0 0.0
    %133 = vmatpush1.msra.mxu0 0.0
    %134 = vmatprep.mubr.f32.mxu0 0.0
    %135 = vmatmul.mubr.f32.gmra.mrb[0].mxu0 %v68
    %v136 = vpop.f32.mrb[0].mxu0
    %v137 = vadd.f32 0.0, %v136
    %v138 = vpop.f32.mrb[0].mxu0
    %139 = vdwg.mxu0
    %140 = vmatprep.subr.mxu0 0.0
    %141 = vmatpush1.msra.mxu0 %v58
    %142 = vmatprep.subr.mxu0 0.0
    %143 = vmatpush1.msra.mxu0 0.0
    %144 = vmatprep.subr.mxu0 0.0
    %145 = vmatpush1.msra.mxu0 0.0
    %146 = vmatprep.subr.mxu0 0.0
    %147 = vmatpush1.msra.mxu0 0.0
    %148 = vmatprep.subr.mxu0 0.0
    %149 = vmatpush1.msra.mxu0 0.0
    %150 = vmatprep.subr.mxu0 0.0
    %151 = vmatpush1.msra.mxu0 0.0
    %152 = vmatprep.subr.mxu0 0.0
    %153 = vmatpush1.msra.mxu0 0.0
    %154 = vmatprep.subr.mxu0 0.0
    %155 = vmatpush1.msra.mxu0 0.0
    %156 = vmatprep.subr.mxu0 0.0
    %157 = vmatpush1.msra.mxu0 0.0
    %158 = vmatprep.subr.mxu0 0.0
    %159 = vmatpush1.msra.mxu0 0.0
    %160 = vmatprep.subr.mxu0 0.0
    %161 = vmatpush1.msra.mxu0 0.0
    %162 = vmatprep.subr.mxu0 0.0
    %163 = vmatpush1.msra.mxu0 0.0
    %164 = vmatprep.subr.mxu0 0.0
    %165 = vmatpush1.msra.mxu0 0.0
    %166 = vmatprep.subr.mxu0 0.0
    %167 = vmatpush1.msra.mxu0 0.0
    %168 = vmatprep.subr.mxu0 0.0
    %169 = vmatpush1.msra.mxu0 0.0
    %170 = vmatprep.subr.mxu0 0.0
    %171 = vmatpush1.msra.mxu0 0.0
    %172 = vmatprep.subr.mxu0 0.0
    %173 = vmatpush1.msra.mxu0 0.0
    %174 = vmatprep.subr.mxu0 0.0
    %175 = vmatpush1.msra.mxu0 0.0
    %176 = vmatprep.subr.mxu0 0.0
    %177 = vmatpush1.msra.mxu0 0.0
    %178 = vmatprep.subr.mxu0 0.0
    %179 = vmatpush1.msra.mxu0 0.0
    %180 = vmatprep.subr.mxu0 0.0
    %181 = vmatpush1.msra.mxu0 0.0
    %182 = vmatprep.subr.mxu0 0.0
    %183 = vmatpush1.msra.mxu0 0.0
    %184 = vmatprep.subr.mxu0 0.0
    %185 = vmatpush1.msra.mxu0 0.0
    %186 = vmatprep.subr.mxu0 0.0
    %187 = vmatpush1.msra.mxu0 0.0
    %188 = vmatprep.subr.mxu0 0.0
    %189 = vmatpush1.msra.mxu0 0.0
    %190 = vmatprep.subr.mxu0 0.0
    %191 = vmatpush1.msra.mxu0 0.0
    %192 = vmatprep.subr.mxu0 0.0
    %193 = vmatpush1.msra.mxu0 0.0
    %194 = vmatprep.subr.mxu0 0.0
    %195 = vmatpush1.msra.mxu0 0.0
    %196 = vmatprep.subr.mxu0 0.0
    %197 = vmatpush1.msra.mxu0 0.0
    %198 = vmatprep.subr.mxu0 0.0
    %199 = vmatpush1.msra.mxu0 0.0
    %200 = vmatprep.subr.mxu0 0.0
    %201 = vmatpush1.msra.mxu0 0.0
    %202 = vmatprep.subr.mxu0 0.0
    %203 = vmatpush1.msra.mxu0 0.0
    %204 = vmatprep.mubr.f32.mxu0 0.0
    %205 = vmatmul.mubr.f32.gmra.mrb[0].mxu0 %v68
    %v206 = vpop.f32.mrb[0].mxu0
    %v207 = vadd.f32 0.0, %v206
    %v208 = vpop.f32.mrb[0].mxu0
    %209 = vdwg.mxu0
    %210 = vmatprep.subr.mxu0 0.0
    %211 = vmatpush1.msra.mxu0 %v59
    %212 = vmatprep.subr.mxu0 0.0
    %213 = vmatpush1.msra.mxu0 0.0
    %214 = vmatprep.subr.mxu0 0.0
    %215 = vmatpush1.msra.mxu0 0.0
    %216 = vmatprep.subr.mxu0 0.0
    %217 = vmatpush1.msra.mxu0 0.0
    %218 = vmatprep.subr.mxu0 0.0
    %219 = vmatpush1.msra.mxu0 0.0
    %220 = vmatprep.subr.mxu0 0.0
    %221 = vmatpush1.msra.mxu0 0.0
    %222 = vmatprep.subr.mxu0 0.0
    %223 = vmatpush1.msra.mxu0 0.0
    %224 = vmatprep.subr.mxu0 0.0
    %225 = vmatpush1.msra.mxu0 0.0
    %226 = vmatprep.subr.mxu0 0.0
    %227 = vmatpush1.msra.mxu0 0.0
    %228 = vmatprep.subr.mxu0 0.0
    %229 = vmatpush1.msra.mxu0 0.0
    %230 = vmatprep.subr.mxu0 0.0
    %231 = vmatpush1.msra.mxu0 0.0
    %232 = vmatprep.subr.mxu0 0.0
    %233 = vmatpush1.msra.mxu0 0.0
    %234 = vmatprep.subr.mxu0 0.0
    %235 = vmatpush1.msra.mxu0 0.0
    %236 = vmatprep.subr.mxu0 0.0
    %237 = vmatpush1.msra.mxu0 0.0
    %238 = vmatprep.subr.mxu0 0.0
    %239 = vmatpush1.msra.mxu0 0.0
    %240 = vmatprep.subr.mxu0 0.0
    %241 = vmatpush1.msra.mxu0 0.0
    %242 = vmatprep.subr.mxu0 0.0
    %243 = vmatpush1.msra.mxu0 0.0
    %244 = vmatprep.subr.mxu0 0.0
    %245 = vmatpush1.msra.mxu0 0.0
    %246 = vmatprep.subr.mxu0 0.0
    %247 = vmatpush1.msra.mxu0 0.0
    %248 = vmatprep.subr.mxu0 0.0
    %249 = vmatpush1.msra.mxu0 0.0
    %250 = vmatprep.subr.mxu0 0.0
    %251 = vmatpush1.msra.mxu0 0.0
    %252 = vmatprep.subr.mxu0 0.0
    %253 = vmatpush1.msra.mxu0 0.0
    %254 = vmatprep.subr.mxu0 0.0
    %255 = vmatpush1.msra.mxu0 0.0
    %256 = vmatprep.subr.mxu0 0.0
    %257 = vmatpush1.msra.mxu0 0.0
    %258 = vmatprep.subr.mxu0 0.0
    %259 = vmatpush1.msra.mxu0 0.0
    %260 = vmatprep.subr.mxu0 0.0
    %261 = vmatpush1.msra.mxu0 0.0
    %262 = vmatprep.subr.mxu0 0.0
    %263 = vmatpush1.msra.mxu0 0.0
    %264 = vmatprep.subr.mxu0 0.0
    %265 = vmatpush1.msra.mxu0 0.0
    %266 = vmatprep.subr.mxu0 0.0
    %267 = vmatpush1.msra.mxu0 0.0
    %268 = vmatprep.subr.mxu0 0.0
    %269 = vmatpush1.msra.mxu0 0.0
    %270 = vmatprep.subr.mxu0 0.0
    %271 = vmatpush1.msra.mxu0 0.0
    %272 = vmatprep.subr.mxu0 0.0
    %273 = vmatpush1.msra.mxu0 0.0
    %274 = vmatprep.mubr.f32.mxu0 0.0
    %275 = vmatmul.mubr.f32.gmra.mrb[0].mxu0 %v68
    %v276 = vpop.f32.mrb[0].mxu0
    %v277 = vadd.f32 0.0, %v276
    %v278 = vpop.f32.mrb[0].mxu0
    %279 = vdwg.mxu0
    %280 = vmatprep.subr.mxu0 0.0
    %281 = vmatpush1.msra.mxu0 %v60
    %282 = vmatprep.subr.mxu0 0.0
    %283 = vmatpush1.msra.mxu0 0.0
    %284 = vmatprep.subr.mxu0 0.0
    %285 = vmatpush1.msra.mxu0 0.0
    %286 = vmatprep.subr.mxu0 0.0
    %287 = vmatpush1.msra.mxu0 0.0
    %288 = vmatprep.subr.mxu0 0.0
    %289 = vmatpush1.msra.mxu0 0.0
    %290 = vmatprep.subr.mxu0 0.0
    %291 = vmatpush1.msra.mxu0 0.0
    %292 = vmatprep.subr.mxu0 0.0
    %293 = vmatpush1.msra.mxu0 0.0
    %294 = vmatprep.subr.mxu0 0.0
    %295 = vmatpush1.msra.mxu0 0.0
    %296 = vmatprep.subr.mxu0 0.0
    %297 = vmatpush1.msra.mxu0 0.0
    %298 = vmatprep.subr.mxu0 0.0
    %299 = vmatpush1.msra.mxu0 0.0
    %300 = vmatprep.subr.mxu0 0.0
    %301 = vmatpush1.msra.mxu0 0.0
    %302 = vmatprep.subr.mxu0 0.0
    %303 = vmatpush1.msra.mxu0 0.0
    %304 = vmatprep.subr.mxu0 0.0
    %305 = vmatpush1.msra.mxu0 0.0
    %306 = vmatprep.subr.mxu0 0.0
    %307 = vmatpush1.msra.mxu0 0.0
    %308 = vmatprep.subr.mxu0 0.0
    %309 = vmatpush1.msra.mxu0 0.0
    %310 = vmatprep.subr.mxu0 0.0
    %311 = vmatpush1.msra.mxu0 0.0
    %312 = vmatprep.subr.mxu0 0.0
    %313 = vmatpush1.msra.mxu0 0.0
    %314 = vmatprep.subr.mxu0 0.0
    %315 = vmatpush1.msra.mxu0 0.0
    %316 = vmatprep.subr.mxu0 0.0
    %317 = vmatpush1.msra.mxu0 0.0
    %318 = vmatprep.subr.mxu0 0.0
    %319 = vmatpush1.msra.mxu0 0.0
    %320 = vmatprep.subr.mxu0 0.0
    %321 = vmatpush1.msra.mxu0 0.0
    %322 = vmatprep.subr.mxu0 0.0
    %323 = vmatpush1.msra.mxu0 0.0
    %324 = vmatprep.subr.mxu0 0.0
    %325 = vmatpush1.msra.mxu0 0.0
    %326 = vmatprep.subr.mxu0 0.0
    %327 = vmatpush1.msra.mxu0 0.0
    %328 = vmatprep.subr.mxu0 0.0
    %329 = vmatpush1.msra.mxu0 0.0
    %330 = vmatprep.subr.mxu0 0.0
    %331 = vmatpush1.msra.mxu0 0.0
    %332 = vmatprep.subr.mxu0 0.0
    %333 = vmatpush1.msra.mxu0 0.0
    %334 = vmatprep.subr.mxu0 0.0
    %335 = vmatpush1.msra.mxu0 0.0
    %336 = vmatprep.subr.mxu0 0.0
    %337 = vmatpush1.msra.mxu0 0.0
    %338 = vmatprep.subr.mxu0 0.0
    %339 = vmatpush1.msra.mxu0 0.0
    %340 = vmatprep.subr.mxu0 0.0
    %341 = vmatpush1.msra.mxu0 0.0
    %342 = vmatprep.subr.mxu0 0.0
    %343 = vmatpush1.msra.mxu0 0.0
    %344 = vmatprep.mubr.f32.mxu0 0.0
    %345 = vmatmul.mubr.f32.gmra.mrb[0].mxu0 %v68
    %v346 = vpop.f32.mrb[0].mxu0
    %v347 = vadd.f32 0.0, %v346
    %v348 = vpop.f32.mrb[0].mxu0
    %349 = vdwg.mxu0
    %350 = vmatprep.subr.mxu0 0.0
    %351 = vmatpush1.msra.mxu0 %v61
    %352 = vmatprep.subr.mxu0 0.0
    %353 = vmatpush1.msra.mxu0 0.0
    %354 = vmatprep.subr.mxu0 0.0
    %355 = vmatpush1.msra.mxu0 0.0
    %356 = vmatprep.subr.mxu0 0.0
    %357 = vmatpush1.msra.mxu0 0.0
    %358 = vmatprep.subr.mxu0 0.0
    %359 = vmatpush1.msra.mxu0 0.0
    %360 = vmatprep.subr.mxu0 0.0
    %361 = vmatpush1.msra.mxu0 0.0
    %362 = vmatprep.subr.mxu0 0.0
    %363 = vmatpush1.msra.mxu0 0.0
    %364 = vmatprep.subr.mxu0 0.0
    %365 = vmatpush1.msra.mxu0 0.0
    %366 = vmatprep.subr.mxu0 0.0
    %367 = vmatpush1.msra.mxu0 0.0
    %368 = vmatprep.subr.mxu0 0.0
    %369 = vmatpush1.msra.mxu0 0.0
    %370 = vmatprep.subr.mxu0 0.0
    %371 = vmatpush1.msra.mxu0 0.0
    %372 = vmatprep.subr.mxu0 0.0
    %373 = vmatpush1.msra.mxu0 0.0
    %374 = vmatprep.subr.mxu0 0.0
    %375 = vmatpush1.msra.mxu0 0.0
    %376 = vmatprep.subr.mxu0 0.0
    %377 = vmatpush1.msra.mxu0 0.0
    %378 = vmatprep.subr.mxu0 0.0
    %379 = vmatpush1.msra.mxu0 0.0
    %380 = vmatprep.subr.mxu0 0.0
    %381 = vmatpush1.msra.mxu0 0.0
    %382 = vmatprep.subr.mxu0 0.0
    %383 = vmatpush1.msra.mxu0 0.0
    %384 = vmatprep.subr.mxu0 0.0
    %385 = vmatpush1.msra.mxu0 0.0
    %386 = vmatprep.subr.mxu0 0.0
    %387 = vmatpush1.msra.mxu0 0.0
    %388 = vmatprep.subr.mxu0 0.0
    %389 = vmatpush1.msra.mxu0 0.0
    %390 = vmatprep.subr.mxu0 0.0
    %391 = vmatpush1.msra.mxu0 0.0
    %392 = vmatprep.subr.mxu0 0.0
    %393 = vmatpush1.msra.mxu0 0.0
    %394 = vmatprep.subr.mxu0 0.0
    %395 = vmatpush1.msra.mxu0 0.0
    %396 = vmatprep.subr.mxu0 0.0
    %397 = vmatpush1.msra.mxu0 0.0
    %398 = vmatprep.subr.mxu0 0.0
    %399 = vmatpush1.msra.mxu0 0.0
    %400 = vmatprep.subr.mxu0 0.0
    %401 = vmatpush1.msra.mxu0 0.0
    %402 = vmatprep.subr.mxu0 0.0
    %403 = vmatpush1.msra.mxu0 0.0
    %404 = vmatprep.subr.mxu0 0.0
    %405 = vmatpush1.msra.mxu0 0.0
    %406 = vmatprep.subr.mxu0 0.0
    %407 = vmatpush1.msra.mxu0 0.0
    %408 = vmatprep.subr.mxu0 0.0
    %409 = vmatpush1.msra.mxu0 0.0
    %410 = vmatprep.subr.mxu0 0.0
    %411 = vmatpush1.msra.mxu0 0.0
    %412 = vmatprep.subr.mxu0 0.0
    %413 = vmatpush1.msra.mxu0 0.0
    %414 = vmatprep.mubr.f32.mxu0 0.0
    %415 = vmatmul.mubr.f32.gmra.mrb[0].mxu0 %v68
    %v416 = vpop.f32.mrb[0].mxu0
    %v417 = vadd.f32 0.0, %v416
    %v418 = vpop.f32.mrb[0].mxu0
    %419 = vdwg.mxu0
    %420 = vmatprep.subr.mxu0 0.0
    %421 = vmatpush1.msra.mxu0 %v62
    %422 = vmatprep.subr.mxu0 0.0
    %423 = vmatpush1.msra.mxu0 0.0
    %424 = vmatprep.subr.mxu0 0.0
    %425 = vmatpush1.msra.mxu0 0.0
    %426 = vmatprep.subr.mxu0 0.0
    %427 = vmatpush1.msra.mxu0 0.0
    %428 = vmatprep.subr.mxu0 0.0
    %429 = vmatpush1.msra.mxu0 0.0
    %430 = vmatprep.subr.mxu0 0.0
    %431 = vmatpush1.msra.mxu0 0.0
    %432 = vmatprep.subr.mxu0 0.0
    %433 = vmatpush1.msra.mxu0 0.0
    %434 = vmatprep.subr.mxu0 0.0
    %435 = vmatpush1.msra.mxu0 0.0
    %436 = vmatprep.subr.mxu0 0.0
    %437 = vmatpush1.msra.mxu0 0.0
    %438 = vmatprep.subr.mxu0 0.0
    %439 = vmatpush1.msra.mxu0 0.0
    %440 = vmatprep.subr.mxu0 0.0
    %441 = vmatpush1.msra.mxu0 0.0
    %442 = vmatprep.subr.mxu0 0.0
    %443 = vmatpush1.msra.mxu0 0.0
    %444 = vmatprep.subr.mxu0 0.0
    %445 = vmatpush1.msra.mxu0 0.0
    %446 = vmatprep.subr.mxu0 0.0
    %447 = vmatpush1.msra.mxu0 0.0
    %448 = vmatprep.subr.mxu0 0.0
    %449 = vmatpush1.msra.mxu0 0.0
    %450 = vmatprep.subr.mxu0 0.0
    %451 = vmatpush1.msra.mxu0 0.0
    %452 = vmatprep.subr.mxu0 0.0
    %453 = vmatpush1.msra.mxu0 0.0
    %454 = vmatprep.subr.mxu0 0.0
    %455 = vmatpush1.msra.mxu0 0.0
    %456 = vmatprep.subr.mxu0 0.0
    %457 = vmatpush1.msra.mxu0 0.0
    %458 = vmatprep.subr.mxu0 0.0
    %459 = vmatpush1.msra.mxu0 0.0
    %460 = vmatprep.subr.mxu0 0.0
    %461 = vmatpush1.msra.mxu0 0.0
    %462 = vmatprep.subr.mxu0 0.0
    %463 = vmatpush1.msra.mxu0 0.0
    %464 = vmatprep.subr.mxu0 0.0
    %465 = vmatpush1.msra.mxu0 0.0
    %466 = vmatprep.subr.mxu0 0.0
    %467 = vmatpush1.msra.mxu0 0.0
    %468 = vmatprep.subr.mxu0 0.0
    %469 = vmatpush1.msra.mxu0 0.0
    %470 = vmatprep.subr.mxu0 0.0
    %471 = vmatpush1.msra.mxu0 0.0
    %472 = vmatprep.subr.mxu0 0.0
    %473 = vmatpush1.msra.mxu0 0.0
    %474 = vmatprep.subr.mxu0 0.0
    %475 = vmatpush1.msra.mxu0 0.0
    %476 = vmatprep.subr.mxu0 0.0
    %477 = vmatpush1.msra.mxu0 0.0
    %478 = vmatprep.subr.mxu0 0.0
    %479 = vmatpush1.msra.mxu0 0.0
    %480 = vmatprep.subr.mxu0 0.0
    %481 = vmatpush1.msra.mxu0 0.0
    %482 = vmatprep.subr.mxu0 0.0
    %483 = vmatpush1.msra.mxu0 0.0
    %484 = vmatprep.mubr.f32.mxu0 0.0
    %485 = vmatmul.mubr.f32.gmra.mrb[0].mxu0 %v68
    %v486 = vpop.f32.mrb[0].mxu0
    %v487 = vadd.f32 0.0, %v486
    %v488 = vpop.f32.mrb[0].mxu0
    %489 = vdwg.mxu0
    %490 = vmatprep.subr.mxu0 0.0
    %491 = vmatpush1.msra.mxu0 %v63
    %492 = vmatprep.subr.mxu0 0.0
    %493 = vmatpush1.msra.mxu0 0.0
    %494 = vmatprep.subr.mxu0 0.0
    %495 = vmatpush1.msra.mxu0 0.0
    %496 = vmatprep.subr.mxu0 0.0
    %497 = vmatpush1.msra.mxu0 0.0
    %498 = vmatprep.subr.mxu0 0.0
    %499 = vmatpush1.msra.mxu0 0.0
    %500 = vmatprep.subr.mxu0 0.0
    %501 = vmatpush1.msra.mxu0 0.0
    %502 = vmatprep.subr.mxu0 0.0
    %503 = vmatpush1.msra.mxu0 0.0
    %504 = vmatprep.subr.mxu0 0.0
    %505 = vmatpush1.msra.mxu0 0.0
    %506 = vmatprep.subr.mxu0 0.0
    %507 = vmatpush1.msra.mxu0 0.0
    %508 = vmatprep.subr.mxu0 0.0
    %509 = vmatpush1.msra.mxu0 0.0
    %510 = vmatprep.subr.mxu0 0.0
    %511 = vmatpush1.msra.mxu0 0.0
    %512 = vmatprep.subr.mxu0 0.0
    %513 = vmatpush1.msra.mxu0 0.0
    %514 = vmatprep.subr.mxu0 0.0
    %515 = vmatpush1.msra.mxu0 0.0
    %516 = vmatprep.subr.mxu0 0.0
    %517 = vmatpush1.msra.mxu0 0.0
    %518 = vmatprep.subr.mxu0 0.0
    %519 = vmatpush1.msra.mxu0 0.0
    %520 = vmatprep.subr.mxu0 0.0
    %521 = vmatpush1.msra.mxu0 0.0
    %522 = vmatprep.subr.mxu0 0.0
    %523 = vmatpush1.msra.mxu0 0.0
    %524 = vmatprep.subr.mxu0 0.0
    %525 = vmatpush1.msra.mxu0 0.0
    %526 = vmatprep.subr.mxu0 0.0
    %527 = vmatpush1.msra.mxu0 0.0
    %528 = vmatprep.subr.mxu0 0.0
    %529 = vmatpush1.msra.mxu0 0.0
    %530 = vmatprep.subr.mxu0 0.0
    %531 = vmatpush1.msra.mxu0 0.0
    %532 = vmatprep.subr.mxu0 0.0
    %533 = vmatpush1.msra.mxu0 0.0
    %534 = vmatprep.subr.mxu0 0.0
    %535 = vmatpush1.msra.mxu0 0.0
    %536 = vmatprep.subr.mxu0 0.0
    %537 = vmatpush1.msra.mxu0 0.0
    %538 = vmatprep.subr.mxu0 0.0
    %539 = vmatpush1.msra.mxu0 0.0
    %540 = vmatprep.subr.mxu0 0.0
    %541 = vmatpush1.msra.mxu0 0.0
    %542 = vmatprep.subr.mxu0 0.0
    %543 = vmatpush1.msra.mxu0 0.0
    %544 = vmatprep.subr.mxu0 0.0
    %545 = vmatpush1.msra.mxu0 0.0
    %546 = vmatprep.subr.mxu0 0.0
    %547 = vmatpush1.msra.mxu0 0.0
    %548 = vmatprep.subr.mxu0 0.0
    %549 = vmatpush1.msra.mxu0 0.0
    %550 = vmatprep.subr.mxu0 0.0
    %551 = vmatpush1.msra.mxu0 0.0
    %552 = vmatprep.subr.mxu0 0.0
    %553 = vmatpush1.msra.mxu0 0.0
    %554 = vmatprep.mubr.f32.mxu0 0.0
    %555 = vmatmul.mubr.f32.gmra.mrb[0].mxu0 %v68
    %v556 = vpop.f32.mrb[0].mxu0
    %v557 = vadd.f32 0.0, %v556
    %v558 = vpop.f32.mrb[0].mxu0
    %559 = vdwg.mxu0
    %560 = vmatprep.subr.mxu0 0.0
    %561 = vmatpush1.msra.mxu0 %v64
    %562 = vmatprep.subr.mxu0 0.0
    %563 = vmatpush1.msra.mxu0 0.0
    %564 = vmatprep.subr.mxu0 0.0
    %565 = vmatpush1.msra.mxu0 0.0
    %566 = vmatprep.subr.mxu0 0.0
    %567 = vmatpush1.msra.mxu0 0.0
    %568 = vmatprep.subr.mxu0 0.0
    %569 = vmatpush1.msra.mxu0 0.0
    %570 = vmatprep.subr.mxu0 0.0
    %571 = vmatpush1.msra.mxu0 0.0
    %572 = vmatprep.subr.mxu0 0.0
    %573 = vmatpush1.msra.mxu0 0.0
    %574 = vmatprep.subr.mxu0 0.0
    %575 = vmatpush1.msra.mxu0 0.0
    %576 = vmatprep.subr.mxu0 0.0
    %577 = vmatpush1.msra.mxu0 0.0
    %578 = vmatprep.subr.mxu0 0.0
    %579 = vmatpush1.msra.mxu0 0.0
    %580 = vmatprep.subr.mxu0 0.0
    %581 = vmatpush1.msra.mxu0 0.0
    %582 = vmatprep.subr.mxu0 0.0
    %583 = vmatpush1.msra.mxu0 0.0
    %584 = vmatprep.subr.mxu0 0.0
    %585 = vmatpush1.msra.mxu0 0.0
    %586 = vmatprep.subr.mxu0 0.0
    %587 = vmatpush1.msra.mxu0 0.0
    %588 = vmatprep.subr.mxu0 0.0
    %589 = vmatpush1.msra.mxu0 0.0
    %590 = vmatprep.subr.mxu0 0.0
    %591 = vmatpush1.msra.mxu0 0.0
    %592 = vmatprep.subr.mxu0 0.0
    %593 = vmatpush1.msra.mxu0 0.0
    %594 = vmatprep.subr.mxu0 0.0
    %595 = vmatpush1.msra.mxu0 0.0
    %596 = vmatprep.subr.mxu0 0.0
    %597 = vmatpush1.msra.mxu0 0.0
    %598 = vmatprep.subr.mxu0 0.0
    %599 = vmatpush1.msra.mxu0 0.0
    %600 = vmatprep.subr.mxu0 0.0
    %601 = vmatpush1.msra.mxu0 0.0
    %602 = vmatprep.subr.mxu0 0.0
    %603 = vmatpush1.msra.mxu0 0.0
    %604 = vmatprep.subr.mxu0 0.0
    %605 = vmatpush1.msra.mxu0 0.0
    %606 = vmatprep.subr.mxu0 0.0
    %607 = vmatpush1.msra.mxu0 0.0
    %608 = vmatprep.subr.mxu0 0.0
    %609 = vmatpush1.msra.mxu0 0.0
    %610 = vmatprep.subr.mxu0 0.0
    %611 = vmatpush1.msra.mxu0 0.0
    %612 = vmatprep.subr.mxu0 0.0
    %613 = vmatpush1.msra.mxu0 0.0
    %614 = vmatprep.subr.mxu0 0.0
    %615 = vmatpush1.msra.mxu0 0.0
    %616 = vmatprep.subr.mxu0 0.0
    %617 = vmatpush1.msra.mxu0 0.0
    %618 = vmatprep.subr.mxu0 0.0
    %619 = vmatpush1.msra.mxu0 0.0
    %620 = vmatprep.subr.mxu0 0.0
    %621 = vmatpush1.msra.mxu0 0.0
    %622 = vmatprep.subr.mxu0 0.0
    %623 = vmatpush1.msra.mxu0 0.0
    %624 = vmatprep.mubr.f32.mxu0 0.0
    %625 = vmatmul.mubr.f32.gmra.mrb[0].mxu0 %v68
    %v626 = vpop.f32.mrb[0].mxu0
    %v627 = vadd.f32 0.0, %v626
    %v628 = vpop.f32.mrb[0].mxu0
    %629 = vdwg.mxu0
    %vm630 = vcmp.gt.f32.partialorder %v137, 0.0
    %vm631 = vcmp.gt.f32.partialorder %v207, 0.0
    %vm632 = vcmp.gt.f32.partialorder %v277, 0.0
    %vm633 = vcmp.gt.f32.partialorder %v347, 0.0
    %vm634 = vcmp.gt.f32.partialorder %v417, 0.0
    %vm635 = vcmp.gt.f32.partialorder %v487, 0.0
    %vm636 = vcmp.gt.f32.partialorder %v557, 0.0
    %vm637 = vcmp.gt.f32.partialorder %v627, 0.0
    %v638 = vmul.f32 %v137, 0.01
    %v639 = vmul.f32 %v207, 0.01
    %v640 = vmul.f32 %v277, 0.01
    %v641 = vmul.f32 %v347, 0.01
    %v642 = vmul.f32 %v417, 0.01
    %v643 = vmul.f32 %v487, 0.01
    %v644 = vmul.f32 %v557, 0.01
    %v645 = vmul.f32 %v627, 0.01
    %v646 = vsel %vm630, %v137, %v638
    %v647 = vsel %vm631, %v207, %v639
    %v648 = vsel %vm632, %v277, %v640
    %v649 = vsel %vm633, %v347, %v641
    %v650 = vsel %vm634, %v417, %v642
    %v651 = vsel %vm635, %v487, %v643
    %v652 = vsel %vm636, %v557, %v644
    %v653 = vsel %vm637, %v627, %v645
    %v662 = vrot.slane %v647, 7
    %vm663 = vcmask 1041409
    %v664 = vsel %vm663, %v662, %v646
    %v665 = vrot.slane %v648, 6
    %vm666 = vcmask 1042434
    %v667 = vsel %vm666, %v665, %v664
    %v668 = vrot.slane %v649, 5
    %vm669 = vcmask 1043459
    %v670 = vsel %vm669, %v668, %v667
    %v671 = vrot.slane %v650, 4
    %vm672 = vcmask 1044484
    %v673 = vsel %vm672, %v671, %v670
    %v674 = vrot.slane %v651, 3
    %vm675 = vcmask 1045509
    %v676 = vsel %vm675, %v674, %v673
    %v677 = vrot.slane %v652, 2
    %vm678 = vcmask 1046534
    %v679 = vsel %vm678, %v677, %v676
    %v680 = vrot.slane %v653, 1
    %vm681 = vcmask 1047559
    %v682 = vsel %vm681, %v680, %v679
    %v684 = vrot.slane %v646, 1
    %v685 = vsel %vm663, %v647, %v684
    %v686 = vrot.slane %v648, 7
    %v687 = vsel %vm666, %v686, %v685
    %v688 = vrot.slane %v649, 6
    %v689 = vsel %vm669, %v688, %v687
    %v690 = vrot.slane %v650, 5
    %v691 = vsel %vm672, %v690, %v689
    %v692 = vrot.slane %v651, 4
    %v693 = vsel %vm675, %v692, %v691
    %v694 = vrot.slane %v652, 3
    %v695 = vsel %vm678, %v694, %v693
    %v696 = vrot.slane %v653, 2
    %v697 = vsel %vm681, %v696, %v695
    %698 = vrot.lane.b32.xlu0 %v697, 16
    %v699 = vpop.permute.xlu0 %698
    %v701 = vrot.slane %v646, 2
    %v702 = vrot.slane %v647, 1
    %v703 = vsel %vm663, %v702, %v701
    %v704 = vsel %vm666, %v648, %v703
    %v705 = vrot.slane %v649, 7
    %v706 = vsel %vm669, %v705, %v704
    %v707 = vrot.slane %v650, 6
    %v708 = vsel %vm672, %v707, %v706
    %v709 = vrot.slane %v651, 5
    %v710 = vsel %vm675, %v709, %v708
    %v711 = vrot.slane %v652, 4
    %v712 = vsel %vm678, %v711, %v710
    %v713 = vrot.slane %v653, 3
    %v714 = vsel %vm681, %v713, %v712
    %715 = vrot.lane.b32.xlu0 %v714, 32
    %v716 = vpop.permute.xlu0 %715
    %v718 = vrot.slane %v646, 3
    %v719 = vrot.slane %v647, 2
    %v720 = vsel %vm663, %v719, %v718
    %v721 = vrot.slane %v648, 1
    %v722 = vsel %vm666, %v721, %v720
    %v723 = vsel %vm669, %v649, %v722
    %v724 = vrot.slane %v650, 7
    %v725 = vsel %vm672, %v724, %v723
    %v726 = vrot.slane %v651, 6
    %v727 = vsel %vm675, %v726, %v725
    %v728 = vrot.slane %v652, 5
    %v729 = vsel %vm678, %v728, %v727
    %v730 = vrot.slane %v653, 4
    %v731 = vsel %vm681, %v730, %v729
    %732 = vrot.lane.b32.xlu0 %v731, 48
    %v733 = vpop.permute.xlu0 %732
    %v735 = vrot.slane %v646, 4
    %v736 = vrot.slane %v647, 3
    %v737 = vsel %vm663, %v736, %v735
    %v738 = vrot.slane %v648, 2
    %v739 = vsel %vm666, %v738, %v737
    %v740 = vrot.slane %v649, 1
    %v741 = vsel %vm669, %v740, %v739
    %v742 = vsel %vm672, %v650, %v741
    %v743 = vrot.slane %v651, 7
    %v744 = vsel %vm675, %v743, %v742
    %v745 = vrot.slane %v652, 6
    %v746 = vsel %vm678, %v745, %v744
    %v747 = vrot.slane %v653, 5
    %v748 = vsel %vm681, %v747, %v746
    %749 = vrot.lane.b32.xlu0 %v748, 64
    %v750 = vpop.permute.xlu0 %749
    %v752 = vrot.slane %v646, 5
    %v753 = vrot.slane %v647, 4
    %v754 = vsel %vm663, %v753, %v752
    %v755 = vrot.slane %v648, 3
    %v756 = vsel %vm666, %v755, %v754
    %v757 = vrot.slane %v649, 2
    %v758 = vsel %vm669, %v757, %v756
    %v759 = vrot.slane %v650, 1
    %v760 = vsel %vm672, %v759, %v758
    %v761 = vsel %vm675, %v651, %v760
    %v762 = vrot.slane %v652, 7
    %v763 = vsel %vm678, %v762, %v761
    %v764 = vrot.slane %v653, 6
    %v765 = vsel %vm681, %v764, %v763
    %766 = vrot.lane.b32.xlu0 %v765, 80
    %v767 = vpop.permute.xlu0 %766
    %v769 = vrot.slane %v646, 6
    %v770 = vrot.slane %v647, 5
    %v771 = vsel %vm663, %v770, %v769
    %v772 = vrot.slane %v648, 4
    %v773 = vsel %vm666, %v772, %v771
    %v774 = vrot.slane %v649, 3
    %v775 = vsel %vm669, %v774, %v773
    %v776 = vrot.slane %v650, 2
    %v777 = vsel %vm672, %v776, %v775
    %v778 = vrot.slane %v651, 1
    %v779 = vsel %vm675, %v778, %v777
    %v780 = vsel %vm678, %v652, %v779
    %v781 = vrot.slane %v653, 7
    %v782 = vsel %vm681, %v781, %v780
    %783 = vrot.lane.b32.xlu0 %v782, 96
    %v784 = vpop.permute.xlu0 %783
    %v786 = vrot.slane %v646, 7
    %v787 = vrot.slane %v647, 6
    %v788 = vsel %vm663, %v787, %v786
    %v789 = vrot.slane %v648, 5
    %v790 = vsel %vm666, %v789, %v788
    %v791 = vrot.slane %v649, 4
    %v792 = vsel %vm669, %v791, %v790
    %v793 = vrot.slane %v650, 3
    %v794 = vsel %vm672, %v793, %v792
    %v795 = vrot.slane %v651, 2
    %v796 = vsel %vm675, %v795, %v794
    %v797 = vrot.slane %v652, 1
    %v798 = vsel %vm678, %v797, %v796
    %v799 = vsel %vm681, %v653, %v798
    %800 = vrot.lane.b32.xlu0 %v799, 112
    %v801 = vpop.permute.xlu0 %800
    %vm803 = vcmask 130048
    %v804 = vsel %vm803, %v682, %v699
    %vm805 = vcmask 261120
    %v806 = vsel %vm805, %v804, %v716
    %vm807 = vcmask 392192
    %v808 = vsel %vm807, %v806, %v733
    %vm809 = vcmask 523264
    %v810 = vsel %vm809, %v808, %v750
    %vm811 = vcmask 654336
    %v812 = vsel %vm811, %v810, %v767
    %vm813 = vcmask 785408
    %v814 = vsel %vm813, %v812, %v784
    %vm815 = vcmask 916480
    %v816 = vsel %vm815, %v814, %v801
    %v817 = vld [vmem:[#allocation7] sm:$0xff]
    %v818 = vld [vmem:[#allocation7 + $0x8] sm:$0xff]
    %v819 = vld [vmem:[#allocation7 + $0x10] sm:$0xff]
    %v820 = vld [vmem:[#allocation7 + $0x18] sm:$0xff]
    %v821 = vld [vmem:[#allocation7 + $0x20] sm:$0xff]
    %v822 = vld [vmem:[#allocation7 + $0x28] sm:$0xff]
    %v823 = vld [vmem:[#allocation7 + $0x30] sm:$0xff]
    %v824 = vld [vmem:[#allocation7 + $0x38] sm:$0xff]
    %v825 = vld [vmem:[#allocation7 + $0x40] sm:$0xff]
    %v826 = vld [vmem:[#allocation7 + $0x48] sm:$0xff]
    %v827 = vld [vmem:[#allocation7 + $0x50] sm:$0xff]
    %v828 = vld [vmem:[#allocation7 + $0x58] sm:$0xff]
    %v829 = vld [vmem:[#allocation7 + $0x60] sm:$0xff]
    %v830 = vld [vmem:[#allocation7 + $0x68] sm:$0xff]
    %v831 = vld [vmem:[#allocation7 + $0x70] sm:$0xff]
    %v832 = vld [vmem:[#allocation7 + $0x78] sm:$0xff]
    %v833 = vld [vmem:[%s3] sm:$0x1]
    %v835 = vlaneseq
    %v836 = vshrl.u32 %v835, 7
    %v837 = vsub.s32 0, %v836
    %v838 = vrot.slane %v833, %v837
    %840 = vmatprep.subr.mxu0 0.0
    %841 = vmatpush1.msra.mxu0 %v817
    %842 = vmatprep.subr.mxu0 0.0
    %843 = vmatpush1.msra.mxu0 %v818
    %844 = vmatprep.subr.mxu0 0.0
    %845 = vmatpush1.msra.mxu0 %v819
    %846 = vmatprep.subr.mxu0 0.0
    %847 = vmatpush1.msra.mxu0 %v820
    %848 = vmatprep.subr.mxu0 0.0
    %849 = vmatpush1.msra.mxu0 %v821
    %850 = vmatprep.subr.mxu0 0.0
    %851 = vmatpush1.msra.mxu0 %v822
    %852 = vmatprep.subr.mxu0 0.0
    %853 = vmatpush1.msra.mxu0 %v823
    %854 = vmatprep.subr.mxu0 0.0
    %855 = vmatpush1.msra.mxu0 %v824
    %856 = vmatprep.subr.mxu0 0.0
    %857 = vmatpush1.msra.mxu0 %v825
    %858 = vmatprep.subr.mxu0 0.0
    %859 = vmatpush1.msra.mxu0 %v826
    %860 = vmatprep.subr.mxu0 0.0
    %861 = vmatpush1.msra.mxu0 %v827
    %862 = vmatprep.subr.mxu0 0.0
    %863 = vmatpush1.msra.mxu0 %v828
    %864 = vmatprep.subr.mxu0 0.0
    %865 = vmatpush1.msra.mxu0 %v829
    %866 = vmatprep.subr.mxu0 0.0
    %867 = vmatpush1.msra.mxu0 %v830
    %868 = vmatprep.subr.mxu0 0.0
    %869 = vmatpush1.msra.mxu0 %v831
    %870 = vmatprep.subr.mxu0 0.0
    %871 = vmatpush1.msra.mxu0 %v832
    %872 = vmatprep.subr.mxu0 0.0
    %873 = vmatpush1.msra.mxu0 0.0
    %874 = vmatprep.subr.mxu0 0.0
    %875 = vmatpush1.msra.mxu0 0.0
    %876 = vmatprep.subr.mxu0 0.0
    %877 = vmatpush1.msra.mxu0 0.0
    %878 = vmatprep.subr.mxu0 0.0
    %879 = vmatpush1.msra.mxu0 0.0
    %880 = vmatprep.subr.mxu0 0.0
    %881 = vmatpush1.msra.mxu0 0.0
    %882 = vmatprep.subr.mxu0 0.0
    %883 = vmatpush1.msra.mxu0 0.0
    %884 = vmatprep.subr.mxu0 0.0
    %885 = vmatpush1.msra.mxu0 0.0
    %886 = vmatprep.subr.mxu0 0.0
    %887 = vmatpush1.msra.mxu0 0.0
    %888 = vmatprep.subr.mxu0 0.0
    %889 = vmatpush1.msra.mxu0 0.0
    %890 = vmatprep.subr.mxu0 0.0
    %891 = vmatpush1.msra.mxu0 0.0
    %892 = vmatprep.subr.mxu0 0.0
    %893 = vmatpush1.msra.mxu0 0.0
    %894 = vmatprep.subr.mxu0 0.0
    %895 = vmatpush1.msra.mxu0 0.0
    %896 = vmatprep.subr.mxu0 0.0
    %897 = vmatpush1.msra.mxu0 0.0
    %898 = vmatprep.subr.mxu0 0.0
    %899 = vmatpush1.msra.mxu0 0.0
    %900 = vmatprep.subr.mxu0 0.0
    %901 = vmatpush1.msra.mxu0 0.0
    %902 = vmatprep.subr.mxu0 0.0
    %903 = vmatpush1.msra.mxu0 0.0
    %904 = vmatprep.mubr.f32.mxu0 0.0
    %905 = vmatmul.mubr.f32.gmra.mrb[0].mxu0 %v816
    %v906 = vpop.f32.mrb[0].mxu0
    %v907 = vadd.f32 %v838, %v906
    %v908 = vpop.f32.mrb[0].mxu0
    %909 = vdwg.mxu0
    %vm910 = vcmp.gt.f32.partialorder %v907, 0.0
    %v911 = vmul.f32 %v907, 0.01
    %v912 = vsel %vm910, %v907, %v911
    %913 = vst [vmem:[#allocation8] sm:$0xff] %v912
    // Predicated region
    $region30: #{tpu_custom_call.1} parent=1 // pred_check
      _
    $region31: #{tpu_custom_call.1} parent=1 // pred_check_branch
      %915 = sbr.rel (0) target = $region33
    $region32: #{tpu_custom_call.1} parent=1 // pred_region
      %s917 = ssub.s32 128, 128
      %918 = vsyncadd [#allocation4], %s917
      %s920 = sshll.u32 [#allocation8], 4
      %s921 = int_to_ptr.vmem [resolvable:$true] %s920
      %923 = dma.vmem_to_hbm [thread:$0]  %s921, 128, %s4, [#allocation4]
    $region33: #{tpu_custom_call.1} parent=1 // pred_fallthru
      _
    // Predicated region
    $region34: #{tpu_custom_call.1} parent=1 // pred_check
      _
    $region35: #{tpu_custom_call.1} parent=1 // pred_check_branch
      %925 = sbr.rel (0) target = $region37
    $region36: #{tpu_custom_call.1} parent=1 // pred_region
      %926 = dma.done [#allocation4], 128
    $region37: #{tpu_custom_call.1} parent=1 // pred_fallthru
      _
    %927 = vsyncpa [#allocation3], 1
    %928 = vsyncpa [#allocation6], 1
    %929 = vsyncpa [#allocation4], 1

</llo_original>
